<compile_context>
chip_gen: v7x
topology: tpu7x:2x2x1
jax: 0.10.0
libtpu: 0.0.40
codegen_flags: <defaults>
</compile_context>

<pallas_src>
import functools

import jax
import jax.numpy as jnp
from jax import lax
from jax.experimental import pallas as pl
from jax.experimental.pallas import tpu as pltpu

EPS = 1e-5  # nn.BatchNorm3d default eps


# --------------------------- Pallas kernels ---------------------------------

def _pw_chain_kernel(x_ref, w1_ref, s1_ref, b1_ref, w2_ref, o_ref):
    # conv1 + bn1 + relu + conv2[0], as two chained matmuls on lane-dense tiles
    x = x_ref[...]
    h = jnp.dot(x, w1_ref[...], preferred_element_type=jnp.float32)
    h = jnp.maximum(h * s1_ref[...] + b1_ref[...], 0.0)
    z = jnp.dot(h.astype(x.dtype), w2_ref[...], preferred_element_type=jnp.float32)
    o_ref[...] = z.astype(o_ref.dtype)


def _dw_pw_residual_kernel(y_ref, yp_ref, yn_ref, x_ref,
                           w2d_ref, s2_ref, b2_ref,
                           w3_ref, s3_ref, b3_ref,
                           wd_ref, sd_ref, bd_ref,
                           o_ref, *, D, tD, Ho, Wo, Cm, Cin):
    # depthwise 3x3x3 stride (1,2,2) + bn2 + relu + conv3 + bn3 + shortcut + relu
    f32 = jnp.float32
    d0 = pl.program_id(1) * tD

    # assemble depth halo: [prev plane | tD planes | next plane]; boundary
    # planes are masked to zero (the clamped index_map fetched a valid plane).
    main = y_ref[0].astype(f32)                              # (tD, Ho+1, 2, Wo+1, 2*Cm)
    prev = yp_ref[0].astype(f32) * (d0 > 0).astype(f32)
    nxt = yn_ref[0].astype(f32) * (d0 + tD < D).astype(f32)
    ext = jnp.concatenate([prev, main, nxt], axis=0)         # (tD+2, Ho+1, 2, Wo+1, 2*Cm)

    # padded parity view: h_pad = 2*a + b, so output h_pad = 2*ho + kh maps to
    # (a, b) = off[kh]; same for W (W-parity folded into the last dim).
    off = ((0, 0), (0, 1), (1, 0))
    w2d = w2d_ref[...].astype(f32)                           # (27, Cm)
    acc = jnp.zeros((tD, Ho, Wo, Cm), f32)
    k = 0
    for kd in range(3):
        for kh in range(3):
            ah, bh = off[kh]
            for kw in range(3):
                aw, bw = off[kw]
                tap = ext[kd:kd + tD, ah:ah + Ho, bh,
                          aw:aw + Wo, bw * Cm:(bw + 1) * Cm]
                acc = acc + tap * w2d[k]
                k += 1

    y = jnp.maximum(acc * s2_ref[0] + b2_ref[0], 0.0)        # (tD, Ho, Wo, Cm)

    # conv3 + bn3 and strided 1x1x1 shortcut + bnd as VPU FMA chains
    # (channel counts are tiny -> MXU would be <1% utilized).
    w3 = w3_ref[...].astype(f32)                             # (Cm, Co)
    wd = wd_ref[...].astype(f32)                             # (Cin, Co)
    Co = w3.shape[1]
    # x block holds only even H rows; even W cols are the first Cin lanes.
    xs = x_ref[...][0, :, :, 0, :, :Cin].astype(f32)         # (tD, Ho, Wo, Cin)

    out = jnp.zeros((tD, Ho, Wo, Co), f32)
    for ci in range(Cm):
        out = out + y[..., ci:ci + 1] * w3[ci]
    out = out * s3_ref[0] + b3_ref[0]
    sc = jnp.zeros((tD, Ho, Wo, Co), f32)
    for ci in range(Cin):
        sc = sc + xs[..., ci:ci + 1] * wd[ci]
    out = out + sc * sd_ref[0] + bd_ref[0]
    o_ref[0] = jnp.maximum(out, 0.0).astype(o_ref.dtype)


# --------------------------- wrappers ----------------------------------------

def fused_pointwise_chain(x2, w1, s1, b1, w2p, *, tm=512):
    """relu(bn1(x @ w1)) @ w2p on (M, Cin) rows, one pallas_call."""
    M, Cin = x2.shape
    Cm = w1.shape[1]

    # pack g voxels per row so matmul K/N dims are multiples of 128 (lane-dense)
    g = 1
    if Cin <= 128 and 128 % Cin == 0:
        g = 128 // Cin
        while g > 1 and M % g != 0:
            g //= 2
    Mg = M // g
    xg = x2.reshape(Mg, g * Cin)                     # free reshape
    eye = jnp.eye(g, dtype=w1.dtype)
    w1g = jnp.kron(eye, w1)                          # (g*Cin, g*Cm) block-diagonal
    w2g = jnp.kron(jnp.eye(g, dtype=w2p.dtype), w2p)
    s1g = jnp.tile(s1.astype(jnp.float32), g).reshape(1, g * Cm)
    b1g = jnp.tile(b1.astype(jnp.float32), g).reshape(1, g * Cm)

    tm = int(min(tm, Mg))
    if tm < Mg:
        tm = max((tm // 8) * 8, 8)
    Mpad = pl.cdiv(Mg, tm) * tm
    if Mpad != Mg:
        xg = jnp.pad(xg, ((0, Mpad - Mg), (0, 0)))   # tail handling (rare)

    out = pl.pallas_call(
        _pw_chain_kernel,
        out_shape=jax.ShapeDtypeStruct((Mpad, g * Cm), x2.dtype),
        grid=(Mpad // tm,),
        in_specs=[
            pl.BlockSpec((tm, g * Cin), lambda i: (i, 0)),
            pl.BlockSpec((g * Cin, g * Cm), lambda i: (0, 0)),
            pl.BlockSpec((1, g * Cm), lambda i: (0, 0)),
            pl.BlockSpec((1, g * Cm), lambda i: (0, 0)),
            pl.BlockSpec((g * Cm, g * Cm), lambda i: (0, 0)),
        ],
        out_specs=pl.BlockSpec((tm, g * Cm), lambda i: (i, 0)),
        compiler_params=pltpu.CompilerParams(dimension_semantics=("parallel",)),
    )(xg, w1g, s1g, b1g, w2g)
    if Mpad != Mg:
        out = out[:Mg]
    return out.reshape(M, Cm)


def fused_dw_pw_residual(y2, x, w2d, s2, b2, w3, s3, b3, wd, sd, bd):
    """Depthwise 3x3x3 (stride (1,2,2), pad 1) + bn2 + relu + conv3 + bn3 +
    downsample shortcut + residual relu, fused in one pallas_call."""
    N, D, H, W, Cm = y2.shape
    Cin = x.shape[-1]
    Co = w3.shape[1]
    assert H % 2 == 0 and W % 2 == 0, "stride-2 path expects even H, W"
    Ho, Wo = H // 2, W // 2
    tD = next(t for t in (8, 4, 2, 1) if D % t == 0)  # bounded D tile (v7x VMEM)

    # one fused XLA zero-pad of H/W only; depth halo + stride handled in-kernel
    y2p = jnp.pad(y2, ((0, 0), (0, 0), (1, 1), (1, 1), (0, 0)))
    ypv = y2p.reshape(N, D, Ho + 1, 2, Wo + 1, 2 * Cm)    # free reshape
    xv = x.reshape(N, D, Ho, 2, Wo, 2 * Cin)              # free reshape

    f32 = jnp.float32
    s2r, b2r = s2.reshape(1, Cm).astype(f32), b2.reshape(1, Cm).astype(f32)
    s3r, b3r = s3.reshape(1, Co).astype(f32), b3.reshape(1, Co).astype(f32)
    sdr, bdr = sd.reshape(1, Co).astype(f32), bd.reshape(1, Co).astype(f32)

    yblk = (Ho + 1, 2, Wo + 1, 2 * Cm)
    in_specs = [
        pl.BlockSpec((1, tD) + yblk, lambda n, d: (n, d, 0, 0, 0, 0)),
        pl.BlockSpec((1, 1) + yblk,
                     lambda n, d: (n, jnp.maximum(d * tD - 1, 0), 0, 0, 0, 0)),
        pl.BlockSpec((1, 1) + yblk,
                     lambda n, d: (n, jnp.minimum(d * tD + tD, D - 1), 0, 0, 0, 0)),
        # shortcut source: only even-H rows are DMA'd (H-parity block index 0)
        pl.BlockSpec((1, tD, Ho, 1, Wo, 2 * Cin), lambda n, d: (n, d, 0, 0, 0, 0)),
        pl.BlockSpec((27, Cm), lambda n, d: (0, 0)),
        pl.BlockSpec((1, Cm), lambda n, d: (0, 0)),
        pl.BlockSpec((1, Cm), lambda n, d: (0, 0)),
        pl.BlockSpec((Cm, Co), lambda n, d: (0, 0)),
        pl.BlockSpec((1, Co), lambda n, d: (0, 0)),
        pl.BlockSpec((1, Co), lambda n, d: (0, 0)),
        pl.BlockSpec((Cin, Co), lambda n, d: (0, 0)),
        pl.BlockSpec((1, Co), lambda n, d: (0, 0)),
        pl.BlockSpec((1, Co), lambda n, d: (0, 0)),
    ]

    # explicit VMEM budget derived from the block size (with headroom),
    # clamped to stay within every generation's physical VMEM.
    itemsize = jnp.dtype(y2.dtype).itemsize
    yblk_elems = (tD + 2) * (Ho + 1) * 2 * (Wo + 1) * 2 * Cm
    blk_bytes = itemsize * (yblk_elems + tD * Ho * Wo * 2 * Cin + tD * Ho * Wo * Co)
    scratch_bytes = 4 * (yblk_elems + 3 * tD * Ho * Wo * max(Cm, Co))
    vmem_limit = int(min(max(2 * blk_bytes + scratch_bytes + (1 << 20),
                             32 * 1024 * 1024), 64 * 1024 * 1024))

    kernel = functools.partial(_dw_pw_residual_kernel, D=D, tD=tD,
                               Ho=Ho, Wo=Wo, Cm=Cm, Cin=Cin)
    return pl.pallas_call(
        kernel,
        out_shape=jax.ShapeDtypeStruct((N, D, Ho, Wo, Co), y2.dtype),
        grid=(N, D // tD),
        in_specs=in_specs,
        out_specs=pl.BlockSpec((1, tD, Ho, Wo, Co), lambda n, d: (n, d, 0, 0, 0)),
        compiler_params=pltpu.CompilerParams(
            dimension_semantics=("parallel", "parallel"),
            vmem_limit_bytes=vmem_limit),
    )(ypv, ypv, ypv, xv, w2d, s2r, b2r, w3, s3r, b3r, wd, sdr, bdr)


def bn_fold(gamma, beta, mean, var):
    scale = gamma / jnp.sqrt(var + EPS)
    return scale, beta - mean * scale


def residual_conv3d_forward(x, p, *, tm=512):
    """x: (N, D, H, W, Cin) channels-last. Returns (N, D, H//2, W//2, Cout)."""
    N, D, H, W, Cin = x.shape
    Cm = p["w1"].shape[1]

    s1, b1 = bn_fold(*p["bn1"])
    s2, b2 = bn_fold(*p["bn2"])
    s3, b3 = bn_fold(*p["bn3"])
    sd, bd = bn_fold(*p["bnd"])

    # kernel A: conv1 + bn1 + relu + conv2[0]
    y2 = fused_pointwise_chain(x.reshape(-1, Cin), p["w1"], s1, b1, p["w2p"], tm=tm)
    y2 = y2.reshape(N, D, H, W, Cm)
    # kernel B: depthwise conv2[1] + bn2 + relu + conv3 + bn3 + shortcut + relu
    return fused_dw_pw_residual(y2, x, p["w2d"], s2, b2, p["w3"], s3, b3,
                                p["wd"], sd, bd)


# --------------------------- pure-JAX reference ------------------------------

def ref_forward(x, p):
    def bn(y, g, b, m, v):
        return (y - m) * (g / jnp.sqrt(v + EPS)) + b

    y = jnp.maximum(bn(jnp.einsum("ndhwc,ck->ndhwk", x, p["w1"]), *p["bn1"]), 0.0)
    y = jnp.einsum("ndhwc,ck->ndhwk", y, p["w2p"])
    dw = p["w2d"].reshape(3, 3, 3, 1, -1)   # DHWIO, in/group = 1
    y = lax.conv_general_dilated(
        y, dw, window_strides=(1, 2, 2), padding=((1, 1), (1, 1), (1, 1)),
        dimension_numbers=("NDHWC", "DHWIO", "NDHWC"),
        feature_group_count=y.shape[-1])
    y = jnp.maximum(bn(y, *p["bn2"]), 0.0)
    y = bn(jnp.einsum("ndhwc,ck->ndhwk", y, p["w3"]), *p["bn3"])
    sc = bn(jnp.einsum("ndhwc,ck->ndhwk", x[:, :, ::2, ::2, :], p["wd"]), *p["bnd"])
    return jnp.maximum(y + sc, 0.0)


# --------------------------- params ------------------------------------------

def init_params(key, Cin, Cmid, Cout):
    ks = jax.random.split(key, 9)

    def conv(k, ci, co):
        return jax.random.normal(k, (ci, co), jnp.float32) / jnp.sqrt(float(ci))

    def bn(k, c):
        kg, kb, km, kv = jax.random.split(k, 4)
        gamma = 1.0 + 0.1 * jax.random.normal(kg, (c,), jnp.float32)
        beta = 0.1 * jax.random.normal(kb, (c,), jnp.float32)
        mean = 0.1 * jax.random.normal(km, (c,), jnp.float32)
        var = 1.0 + 0.1 * jax.random.uniform(kv, (c,), jnp.float32)
        return gamma, beta, mean, var

    p = {}
    p["w1"] = conv(ks[0], Cin, Cmid)                     # conv1: 1x1x1
    p["bn1"] = bn(ks[1], Cmid)
    p["w2p"] = conv(ks[2], Cmid, Cmid)                   # conv2[0]: 1x1x1
    # conv2[1]: depthwise, torch weight (Cmid,1,3,3,3) -> (27, Cmid), k=kd*9+kh*3+kw
    p["w2d"] = jax.random.normal(ks[3], (27, Cmid), jnp.float32) / jnp.sqrt(27.0)
    p["bn2"] = bn(ks[4], Cmid)
    p["w3"] = conv(ks[5], Cmid, Cout)                    # conv3: 1x1x1
    # NOTE: the real module zero-inits bn3.weight (zero_init_last); nonzero gamma
    # is used here so the check exercises the full path.
    p["bn3"] = bn(ks[6], Cout)
    p["wd"] = conv(ks[7], Cin, Cout)                     # downsample conv: strided 1x1x1
    p["bnd"] = bn(ks[8], Cout)
    return p


# --------------------------- main --------------------------------------------

if __name__ == "__main__":
    N, Cin, Cmid, Cout = 2, 4, 8, 8
    D, H, W = 4, 16, 32

    key = jax.random.PRNGKey(0)
    kx, kp = jax.random.split(key)

    # PyTorch input convention is NCDHW; build it that way, then convert.
    x_ncdhw = jax.random.normal(kx, (N, Cin, D, H, W), jnp.float32)
    x = jnp.transpose(x_ncdhw, (0, 2, 3, 4, 1))          # -> NDHWC for kernels

    params = init_params(kp, Cin, Cmid, Cout)

    out = jax.block_until_ready(residual_conv3d_forward(x, params))
    ref = jax.block_until_ready(ref_forward(x, params))

    assert out.shape == (N, D, H // 2, W // 2, Cout), out.shape
    err = float(jnp.max(jnp.abs(out - ref)))
    assert err < 2e-3, f"max abs error {err}"
    print("KERNEL_OK")
</pallas_src>

<mosaic_0001>
module attributes {stable_mosaic.version = 11 : i64} {
  func.func @_pw_chain_kernel(%arg0: i32, %arg1: memref<128x128xf32, #tpu.memory_space<vmem>>, %arg2: memref<128x256xf32, #tpu.memory_space<vmem>>, %arg3: memref<1x256xf32, #tpu.memory_space<vmem>>, %arg4: memref<1x256xf32, #tpu.memory_space<vmem>>, %arg5: memref<256x256xf32, #tpu.memory_space<vmem>>, %arg6: memref<128x256xf32, #tpu.memory_space<vmem>>) attributes {dimension_semantics = [#tpu.dimension_semantics<parallel>], iteration_bounds = array<i64: 1>, scalar_prefetch = 0 : i64, scratch_operands = 0 : i64, tpu.core_type = #tpu.core_type<tc>, window_params = [{transform_indices = @transform_0, window_bounds = array<i64: 128, 128>}, {pipeline_mode = #tpu.pipeline_mode<synchronous>, transform_indices = @transform_1, window_bounds = array<i64: 128, 256>}, {pipeline_mode = #tpu.pipeline_mode<synchronous>, transform_indices = @transform_2, window_bounds = array<i64: 1, 256>}, {pipeline_mode = #tpu.pipeline_mode<synchronous>, transform_indices = @transform_3, window_bounds = array<i64: 1, 256>}, {pipeline_mode = #tpu.pipeline_mode<synchronous>, transform_indices = @transform_4, window_bounds = array<i64: 256, 256>}, {transform_indices = @transform_5, window_bounds = array<i64: 128, 256>}]} {
    %c0 = arith.constant 0 : index
    %c0_0 = arith.constant 0 : index
    %0 = vector.load %arg1[%c0, %c0_0] : memref<128x128xf32, #tpu.memory_space<vmem>>, vector<128x128xf32>
    %c0_1 = arith.constant 0 : index
    %c0_2 = arith.constant 0 : index
    %1 = vector.load %arg2[%c0_1, %c0_2] : memref<128x256xf32, #tpu.memory_space<vmem>>, vector<128x256xf32>
    %cst = arith.constant dense<0.000000e+00> : vector<128x256xf32>
    %2 = tpu.matmul %0, %1, %cst {dimension_numbers = #tpu.dot_dimension_numbers<[1], [0], [0], [1], [0, 0, 1, 1], [], []>} : vector<128x128xf32>, vector<128x256xf32>, vector<128x256xf32> -> vector<128x256xf32>
    %c0_3 = arith.constant 0 : index
    %c0_4 = arith.constant 0 : index
    %3 = vector.load %arg3[%c0_3, %c0_4] : memref<1x256xf32, #tpu.memory_space<vmem>>, vector<1x256xf32>
    %4 = vector.broadcast %3 : vector<1x256xf32> to vector<128x256xf32>
    %5 = arith.mulf %2, %4 : vector<128x256xf32>
    %c0_5 = arith.constant 0 : index
    %c0_6 = arith.constant 0 : index
    %6 = vector.load %arg4[%c0_5, %c0_6] : memref<1x256xf32, #tpu.memory_space<vmem>>, vector<1x256xf32>
    %7 = vector.broadcast %6 : vector<1x256xf32> to vector<128x256xf32>
    %8 = arith.addf %5, %7 : vector<128x256xf32>
    %cst_7 = arith.constant 0.000000e+00 : f32
    %9 = vector.broadcast %cst_7 : f32 to vector<128x256xf32>
    %10 = arith.maximumf %8, %9 : vector<128x256xf32>
    %c0_8 = arith.constant 0 : index
    %c0_9 = arith.constant 0 : index
    %11 = vector.load %arg5[%c0_8, %c0_9] : memref<256x256xf32, #tpu.memory_space<vmem>>, vector<256x256xf32>
    %cst_10 = arith.constant dense<0.000000e+00> : vector<128x256xf32>
    %12 = tpu.matmul %10, %11, %cst_10 {dimension_numbers = #tpu.dot_dimension_numbers<[1], [0], [0], [1], [0, 0, 1, 1], [], []>} : vector<128x256xf32>, vector<256x256xf32>, vector<128x256xf32> -> vector<128x256xf32>
    %c0_11 = arith.constant 0 : index
    %c0_12 = arith.constant 0 : index
    %13 = vector.load %arg6[%c0_11, %c0_12] : memref<128x256xf32, #tpu.memory_space<vmem>>, vector<128x256xf32>
    tpu.vector_store %arg6[%c0_11, %c0_12], %12 {strides = array<i32>} : memref<128x256xf32, #tpu.memory_space<vmem>>, vector<128x256xf32>,
    return
  }
  func.func @transform_0(%arg0: i32) -> (i32, i32) {
    %c0_i32 = arith.constant 0 : i32
    %c0_i32_0 = arith.constant 0 : i32
    return %arg0, %c0_i32 : i32, i32
  }
  func.func @transform_1(%arg0: i32) -> (i32, i32) {
    %c0_i32 = arith.constant 0 : i32
    %c0_i32_0 = arith.constant 0 : i32
    %c0_i32_1 = arith.constant 0 : i32
    return %c0_i32, %c0_i32_0 : i32, i32
  }
  func.func @transform_2(%arg0: i32) -> (i32, i32) {
    %c0_i32 = arith.constant 0 : i32
    %c0_i32_0 = arith.constant 0 : i32
    %c0_i32_1 = arith.constant 0 : i32
    return %c0_i32, %c0_i32_0 : i32, i32
  }
  func.func @transform_3(%arg0: i32) -> (i32, i32) {
    %c0_i32 = arith.constant 0 : i32
    %c0_i32_0 = arith.constant 0 : i32
    %c0_i32_1 = arith.constant 0 : i32
    return %c0_i32, %c0_i32_0 : i32, i32
  }
  func.func @transform_4(%arg0: i32) -> (i32, i32) {
    %c0_i32 = arith.constant 0 : i32
    %c0_i32_0 = arith.constant 0 : i32
    %c0_i32_1 = arith.constant 0 : i32
    return %c0_i32, %c0_i32_0 : i32, i32
  }
  func.func @transform_5(%arg0: i32) -> (i32, i32) {
    %c0_i32 = arith.constant 0 : i32
    %c0_i32_0 = arith.constant 0 : i32
    return %arg0, %c0_i32 : i32, i32
  }
}

</mosaic_0001>

<llo_original>
// kernel: tpu_custom_call.1
$region0: #{tpu_custom_call.1}
  #allocation0 [shape = 'u32[]', space=smem, size = 0x4, offset = 0x4, fixed_abs, tag = 'smem constant byte address 0x4 - core index']
  #allocation1 [shape = 'u32[144,128]{1,0:T(1,128)}', space=vmem, size = 0x12000, scoped, tag = 'internal scratch']
  %s0 = inlined_call_operand.hbm [shape: f32[128,128], index: 0, kind: input, shape index: {}]
  %s1 = inlined_call_operand.hbm [shape: f32[128,256], index: 1, kind: input, shape index: {}]
  %s2 = inlined_call_operand.vmem [shape: f32[1,256], index: 2, kind: input, shape index: {}]
  %s3 = inlined_call_operand.vmem [shape: f32[1,256], index: 3, kind: input, shape index: {}]
  %s4 = inlined_call_operand.hbm [shape: f32[256,256], index: 4, kind: input, shape index: {}]
  %s5 = inlined_call_operand.hbm [shape: f32[128,256], index: 5, kind: output, shape index: {}]
  %s6 = sld [smem:[#allocation0]]
  $region42: #{tpu_custom_call.1} parent=0
    _
  %s8 = ssub.s32 1, %s6
  %s9 = scalar_select 0, %s8, %s6
  $region1: #{tpu_custom_call.1} parent=0
    #allocation2 [shape = 'u8[65536]{0}', space=vmem, size = 0x10000, scoped, tag = 'input window, operand 0, single buffered']
    #allocation3 [shape = 's32[1]{0}', space=sflag, size = 0x4, scoped, tag = 'scoped memory for tpu_custom_call.1']
    #allocation4 [shape = 's32[1]{0}', space=sflag, size = 0x4, scoped, tag = 'scoped memory for tpu_custom_call.1']
    #allocation5 [shape = 'u8[131072]{0}', space=vmem, size = 0x20000, scoped, tag = 'input window, operand 1, single buffered']
    #allocation6 [shape = 's32[1]{0}', space=sflag, size = 0x4, scoped, tag = 'scoped memory for tpu_custom_call.1']
    #allocation7 [shape = 'u8[262144]{0}', space=vmem, size = 0x40000, scoped, tag = 'input window, operand 4, single buffered']
    #allocation8 [shape = 'u8[131072]{0}', space=vmem, size = 0x20000, scoped, tag = 'output window, operand 0, single buffered']
    %10 = vsyncpa [#allocation3], 0
    %11 = vsyncpa [#allocation6], 0
    %12 = vsyncpa [#allocation4], 0
    // Predicated region
    $region2: #{tpu_custom_call.1} parent=1 // pred_check
      _
    $region3: #{tpu_custom_call.1} parent=1 // pred_check_branch
      %14 = sbr.rel (0) target = $region5
    $region4: #{tpu_custom_call.1} parent=1 // pred_region
      %s16 = ssub.s32 2048, 2048
      %17 = vsyncadd [#allocation3], %s16
      %s18 = sshll.u32 [#allocation2], 4
      %s19 = int_to_ptr.vmem [resolvable:$true] %s18
      %24 = dma.hbm_to_vmem [thread:$0]  %s0, 2048, %s19, [#allocation3], 128, 128, 8
    $region5: #{tpu_custom_call.1} parent=1 // pred_fallthru
      _
    // Predicated region
    $region6: #{tpu_custom_call.1} parent=1 // pred_check
      _
    $region7: #{tpu_custom_call.1} parent=1 // pred_check_branch
      %26 = sbr.rel (0) target = $region9
    $region8: #{tpu_custom_call.1} parent=1 // pred_region
      %s28 = ssub.s32 4096, 4096
      %29 = vsyncadd [#allocation6], %s28
      %s30 = sshll.u32 [#allocation5], 4
      %s31 = int_to_ptr.vmem [resolvable:$true] %s30
      %36 = dma.hbm_to_vmem [thread:$0]  %s1, 4096, %s31, [#allocation6], 256, 256, 16
    $region9: #{tpu_custom_call.1} parent=1 // pred_fallthru
      _
    // Predicated region
    $region10: #{tpu_custom_call.1} parent=1 // pred_check
      _
    $region11: #{tpu_custom_call.1} parent=1 // pred_check_branch
      %38 = sbr.rel (0) target = $region13
    $region12: #{tpu_custom_call.1} parent=1 // pred_region
      _
    $region13: #{tpu_custom_call.1} parent=1 // pred_fallthru
      _
    // Predicated region
    $region14: #{tpu_custom_call.1} parent=1 // pred_check
      _
    $region15: #{tpu_custom_call.1} parent=1 // pred_check_branch
      %40 = sbr.rel (0) target = $region17
    $region16: #{tpu_custom_call.1} parent=1 // pred_region
      _
    $region17: #{tpu_custom_call.1} parent=1 // pred_fallthru
      _
    // Predicated region
    $region18: #{tpu_custom_call.1} parent=1 // pred_check
      _
    $region19: #{tpu_custom_call.1} parent=1 // pred_check_branch
      %42 = sbr.rel (0) target = $region21
    $region20: #{tpu_custom_call.1} parent=1 // pred_region
      %s44 = ssub.s32 8192, 8192
      %45 = vsyncadd [#allocation6], %s44
      %s46 = sshll.u32 [#allocation7], 4
      %s47 = int_to_ptr.vmem [resolvable:$true] %s46
      %52 = dma.hbm_to_vmem [thread:$0]  %s4, 8192, %s47, [#allocation6], 256, 256, 16
    $region21: #{tpu_custom_call.1} parent=1 // pred_fallthru
      _
    // Predicated region
    $region22: #{tpu_custom_call.1} parent=1 // pred_check
      _
    $region23: #{tpu_custom_call.1} parent=1 // pred_check_branch
      %54 = sbr.rel (0) target = $region25
    $region24: #{tpu_custom_call.1} parent=1 // pred_region
      %55 = dma.done [#allocation3], 2048
    $region25: #{tpu_custom_call.1} parent=1 // pred_fallthru
      _
    // Predicated region
    $region26: #{tpu_custom_call.1} parent=1 // pred_check
      _
    $region27: #{tpu_custom_call.1} parent=1 // pred_check_branch
      %57 = sbr.rel (0) target = $region29
    $region28: #{tpu_custom_call.1} parent=1 // pred_region
      %58 = dma.done [#allocation6], 4096
    $region29: #{tpu_custom_call.1} parent=1 // pred_fallthru
      _
    // Predicated region
    $region30: #{tpu_custom_call.1} parent=1 // pred_check
      _
    $region31: #{tpu_custom_call.1} parent=1 // pred_check_branch
      %60 = sbr.rel (0) target = $region33
    $region32: #{tpu_custom_call.1} parent=1 // pred_region
      %61 = dma.done [#allocation6], 8192
    $region33: #{tpu_custom_call.1} parent=1 // pred_fallthru
      _
    %v62 = vld [vmem:[#allocation2] sm:$0xff]
    %v63 = vld [vmem:[#allocation2 + $0x8] sm:$0xff]
    %v64 = vld [vmem:[#allocation2 + $0x10] sm:$0xff]
    %v65 = vld [vmem:[#allocation2 + $0x18] sm:$0xff]
    %v66 = vld [vmem:[#allocation2 + $0x20] sm:$0xff]
    %v67 = vld [vmem:[#allocation2 + $0x28] sm:$0xff]
    %v68 = vld [vmem:[#allocation2 + $0x30] sm:$0xff]
    %v69 = vld [vmem:[#allocation2 + $0x38] sm:$0xff]
    %v70 = vld [vmem:[#allocation2 + $0x40] sm:$0xff]
    %v71 = vld [vmem:[#allocation2 + $0x48] sm:$0xff]
    %v72 = vld [vmem:[#allocation2 + $0x50] sm:$0xff]
    %v73 = vld [vmem:[#allocation2 + $0x58] sm:$0xff]
    %v74 = vld [vmem:[#allocation2 + $0x60] sm:$0xff]
    %v75 = vld [vmem:[#allocation2 + $0x68] sm:$0xff]
    %v76 = vld [vmem:[#allocation2 + $0x70] sm:$0xff]
    %v77 = vld [vmem:[#allocation2 + $0x78] sm:$0xff]
    %v78 = vld [vmem:[#allocation5] sm:$0xff]
    %v79 = vld [vmem:[#allocation5 + $0x8] sm:$0xff]
    %v80 = vld [vmem:[#allocation5 + $0x10] sm:$0xff]
    %v81 = vld [vmem:[#allocation5 + $0x18] sm:$0xff]
    %v82 = vld [vmem:[#allocation5 + $0x20] sm:$0xff]
    %v83 = vld [vmem:[#allocation5 + $0x28] sm:$0xff]
    %v84 = vld [vmem:[#allocation5 + $0x30] sm:$0xff]
    %v85 = vld [vmem:[#allocation5 + $0x38] sm:$0xff]
    %v86 = vld [vmem:[#allocation5 + $0x40] sm:$0xff]
    %v87 = vld [vmem:[#allocation5 + $0x48] sm:$0xff]
    %v88 = vld [vmem:[#allocation5 + $0x50] sm:$0xff]
    %v89 = vld [vmem:[#allocation5 + $0x58] sm:$0xff]
    %v90 = vld [vmem:[#allocation5 + $0x60] sm:$0xff]
    %v91 = vld [vmem:[#allocation5 + $0x68] sm:$0xff]
    %v92 = vld [vmem:[#allocation5 + $0x70] sm:$0xff]
    %v93 = vld [vmem:[#allocation5 + $0x78] sm:$0xff]
    %v94 = vld [vmem:[#allocation5 + $0x80] sm:$0xff]
    %v95 = vld [vmem:[#allocation5 + $0x88] sm:$0xff]
    %v96 = vld [vmem:[#allocation5 + $0x90] sm:$0xff]
    %v97 = vld [vmem:[#allocation5 + $0x98] sm:$0xff]
    %v98 = vld [vmem:[#allocation5 + $0xa0] sm:$0xff]
    %v99 = vld [vmem:[#allocation5 + $0xa8] sm:$0xff]
    %v100 = vld [vmem:[#allocation5 + $0xb0] sm:$0xff]
    %v101 = vld [vmem:[#allocation5 + $0xb8] sm:$0xff]
    %v102 = vld [vmem:[#allocation5 + $0xc0] sm:$0xff]
    %v103 = vld [vmem:[#allocation5 + $0xc8] sm:$0xff]
    %v104 = vld [vmem:[#allocation5 + $0xd0] sm:$0xff]
    %v105 = vld [vmem:[#allocation5 + $0xd8] sm:$0xff]
    %v106 = vld [vmem:[#allocation5 + $0xe0] sm:$0xff]
    %v107 = vld [vmem:[#allocation5 + $0xe8] sm:$0xff]
    %v108 = vld [vmem:[#allocation5 + $0xf0] sm:$0xff]
    %v109 = vld [vmem:[#allocation5 + $0xf8] sm:$0xff]
    %110 = vmatprep.subr.mxu0 %v79
    %111 = vmatpush1.msra.mxu0 %v78
    %112 = vmatprep.subr.mxu0 %v81
    %113 = vmatpush1.msra.mxu0 %v80
    %114 = vmatprep.subr.mxu0 %v83
    %115 = vmatpush1.msra.mxu0 %v82
    %116 = vmatprep.subr.mxu0 %v85
    %117 = vmatpush1.msra.mxu0 %v84
    %118 = vmatprep.subr.mxu0 %v87
    %119 = vmatpush1.msra.mxu0 %v86
    %120 = vmatprep.subr.mxu0 %v89
    %121 = vmatpush1.msra.mxu0 %v88
    %122 = vmatprep.subr.mxu0 %v91
    %123 = vmatpush1.msra.mxu0 %v90
    %124 = vmatprep.subr.mxu0 %v93
    %125 = vmatpush1.msra.mxu0 %v92
    %126 = vmatprep.subr.mxu0 %v95
    %127 = vmatpush1.msra.mxu0 %v94
    %128 = vmatprep.subr.mxu0 %v97
    %129 = vmatpush1.msra.mxu0 %v96
    %130 = vmatprep.subr.mxu0 %v99
    %131 = vmatpush1.msra.mxu0 %v98
    %132 = vmatprep.subr.mxu0 %v101
    %133 = vmatpush1.msra.mxu0 %v100
    %134 = vmatprep.subr.mxu0 %v103
    %135 = vmatpush1.msra.mxu0 %v102
    %136 = vmatprep.subr.mxu0 %v105
    %137 = vmatpush1.msra.mxu0 %v104
    %138 = vmatprep.subr.mxu0 %v107
    %139 = vmatpush1.msra.mxu0 %v106
    %140 = vmatprep.subr.mxu0 %v109
    %141 = vmatpush1.msra.mxu0 %v108
    %142 = vmatprep.subr.mxu0 0.0
    %143 = vmatpush1.msra.mxu0 0.0
    %144 = vmatprep.subr.mxu0 0.0
    %145 = vmatpush1.msra.mxu0 0.0
    %146 = vmatprep.subr.mxu0 0.0
    %147 = vmatpush1.msra.mxu0 0.0
    %148 = vmatprep.subr.mxu0 0.0
    %149 = vmatpush1.msra.mxu0 0.0
    %150 = vmatprep.subr.mxu0 0.0
    %151 = vmatpush1.msra.mxu0 0.0
    %152 = vmatprep.subr.mxu0 0.0
    %153 = vmatpush1.msra.mxu0 0.0
    %154 = vmatprep.subr.mxu0 0.0
    %155 = vmatpush1.msra.mxu0 0.0
    %156 = vmatprep.subr.mxu0 0.0
    %157 = vmatpush1.msra.mxu0 0.0
    %158 = vmatprep.subr.mxu0 0.0
    %159 = vmatpush1.msra.mxu0 0.0
    %160 = vmatprep.subr.mxu0 0.0
    %161 = vmatpush1.msra.mxu0 0.0
    %162 = vmatprep.subr.mxu0 0.0
    %163 = vmatpush1.msra.mxu0 0.0
    %164 = vmatprep.subr.mxu0 0.0
    %165 = vmatpush1.msra.mxu0 0.0
    %166 = vmatprep.subr.mxu0 0.0
    %167 = vmatpush1.msra.mxu0 0.0
    %168 = vmatprep.subr.mxu0 0.0
    %169 = vmatpush1.msra.mxu0 0.0
    %170 = vmatprep.subr.mxu0 0.0
    %171 = vmatpush1.msra.mxu0 0.0
    %172 = vmatprep.subr.mxu0 0.0
    %173 = vmatpush1.msra.mxu0 0.0
    %174 = vmatprep.mubr.f32.mxu0 0.0
    %175 = vmatmul.mubr.f32.gmra.mrb[0].mxu0 %v62
    %v176 = vpop.f32.mrb[0].mxu0
    %v177 = vadd.f32 0.0, %v176
    %v178 = vpop.f32.mrb[0].mxu0
    %v179 = vadd.f32 0.0, %v178
    %180 = vmatprep.mubr.f32.mxu0 0.0
    %181 = vmatmul.mubr.f32.gmra.mrb[0].mxu0 %v63
    %v182 = vpop.f32.mrb[0].mxu0
    %v183 = vadd.f32 0.0, %v182
    %v184 = vpop.f32.mrb[0].mxu0
    %v185 = vadd.f32 0.0, %v184
    %186 = vmatprep.mubr.f32.mxu0 0.0
    %187 = vmatmul.mubr.f32.gmra.mrb[0].mxu0 %v64
    %v188 = vpop.f32.mrb[0].mxu0
    %v189 = vadd.f32 0.0, %v188
    %v190 = vpop.f32.mrb[0].mxu0
    %v191 = vadd.f32 0.0, %v190
    %192 = vmatprep.mubr.f32.mxu0 0.0
    %193 = vmatmul.mubr.f32.gmra.mrb[0].mxu0 %v65
    %v194 = vpop.f32.mrb[0].mxu0
    %v195 = vadd.f32 0.0, %v194
    %v196 = vpop.f32.mrb[0].mxu0
    %v197 = vadd.f32 0.0, %v196
    %198 = vmatprep.mubr.f32.mxu0 0.0
    %199 = vmatmul.mubr.f32.gmra.mrb[0].mxu0 %v66
    %v200 = vpop.f32.mrb[0].mxu0
    %v201 = vadd.f32 0.0, %v200
    %v202 = vpop.f32.mrb[0].mxu0
    %v203 = vadd.f32 0.0, %v202
    %204 = vmatprep.mubr.f32.mxu0 0.0
    %205 = vmatmul.mubr.f32.gmra.mrb[0].mxu0 %v67
    %v206 = vpop.f32.mrb[0].mxu0
    %v207 = vadd.f32 0.0, %v206
    %v208 = vpop.f32.mrb[0].mxu0
    %v209 = vadd.f32 0.0, %v208
    %210 = vmatprep.mubr.f32.mxu0 0.0
    %211 = vmatmul.mubr.f32.gmra.mrb[0].mxu0 %v68
    %v212 = vpop.f32.mrb[0].mxu0
    %v213 = vadd.f32 0.0, %v212
    %v214 = vpop.f32.mrb[0].mxu0
    %v215 = vadd.f32 0.0, %v214
    %216 = vmatprep.mubr.f32.mxu0 0.0
    %217 = vmatmul.mubr.f32.gmra.mrb[0].mxu0 %v69
    %v218 = vpop.f32.mrb[0].mxu0
    %v219 = vadd.f32 0.0, %v218
    %v220 = vpop.f32.mrb[0].mxu0
    %v221 = vadd.f32 0.0, %v220
    %222 = vmatprep.mubr.f32.mxu0 0.0
    %223 = vmatmul.mubr.f32.gmra.mrb[0].mxu0 %v70
    %v224 = vpop.f32.mrb[0].mxu0
    %v225 = vadd.f32 0.0, %v224
    %v226 = vpop.f32.mrb[0].mxu0
    %v227 = vadd.f32 0.0, %v226
    %228 = vmatprep.mubr.f32.mxu0 0.0
    %229 = vmatmul.mubr.f32.gmra.mrb[0].mxu0 %v71
    %v230 = vpop.f32.mrb[0].mxu0
    %v231 = vadd.f32 0.0, %v230
    %v232 = vpop.f32.mrb[0].mxu0
    %v233 = vadd.f32 0.0, %v232
    %234 = vmatprep.mubr.f32.mxu0 0.0
    %235 = vmatmul.mubr.f32.gmra.mrb[0].mxu0 %v72
    %v236 = vpop.f32.mrb[0].mxu0
    %v237 = vadd.f32 0.0, %v236
    %v238 = vpop.f32.mrb[0].mxu0
    %v239 = vadd.f32 0.0, %v238
    %240 = vmatprep.mubr.f32.mxu0 0.0
    %241 = vmatmul.mubr.f32.gmra.mrb[0].mxu0 %v73
    %v242 = vpop.f32.mrb[0].mxu0
    %v243 = vadd.f32 0.0, %v242
    %v244 = vpop.f32.mrb[0].mxu0
    %v245 = vadd.f32 0.0, %v244
    %246 = vmatprep.mubr.f32.mxu0 0.0
    %247 = vmatmul.mubr.f32.gmra.mrb[0].mxu0 %v74
    %v248 = vpop.f32.mrb[0].mxu0
    %v249 = vadd.f32 0.0, %v248
    %v250 = vpop.f32.mrb[0].mxu0
    %v251 = vadd.f32 0.0, %v250
    %252 = vmatprep.mubr.f32.mxu0 0.0
    %253 = vmatmul.mubr.f32.gmra.mrb[0].mxu0 %v75
    %v254 = vpop.f32.mrb[0].mxu0
    %v255 = vadd.f32 0.0, %v254
    %v256 = vpop.f32.mrb[0].mxu0
    %v257 = vadd.f32 0.0, %v256
    %258 = vmatprep.mubr.f32.mxu0 0.0
    %259 = vmatmul.mubr.f32.gmra.mrb[0].mxu0 %v76
    %v260 = vpop.f32.mrb[0].mxu0
    %v261 = vadd.f32 0.0, %v260
    %v262 = vpop.f32.mrb[0].mxu0
    %v263 = vadd.f32 0.0, %v262
    %264 = vmatprep.mubr.f32.mxu0 0.0
    %265 = vmatmul.mubr.f32.gmra.mrb[0].mxu0 %v77
    %v266 = vpop.f32.mrb[0].mxu0
    %v267 = vadd.f32 0.0, %v266
    %v268 = vpop.f32.mrb[0].mxu0
    %v269 = vadd.f32 0.0, %v268
    %270 = vdwg.mxu0
    %v271 = vld [vmem:[%s2] sm:$0x3]
    %v273 = vlaneseq
    %v274 = vshrl.u32 %v273, 7
    %v275 = vsub.s32 0, %v274
    %v276 = vrot.slane %v271, %v275
    %v277 = vlaneseq
    %v278 = vshrl.u32 %v277, 7
    %v279 = vsub.s32 1, %v278
    %v280 = vrot.slane %v271, %v279
    %v283 = vmul.f32 %v177, %v276
    %v284 = vmul.f32 %v179, %v280
    %v285 = vmul.f32 %v183, %v276
    %v286 = vmul.f32 %v185, %v280
    %v287 = vmul.f32 %v189, %v276
    %v288 = vmul.f32 %v191, %v280
    %v289 = vmul.f32 %v195, %v276
    %v290 = vmul.f32 %v197, %v280
    %v291 = vmul.f32 %v201, %v276
    %v292 = vmul.f32 %v203, %v280
    %v293 = vmul.f32 %v207, %v276
    %v294 = vmul.f32 %v209, %v280
    %v295 = vmul.f32 %v213, %v276
    %v296 = vmul.f32 %v215, %v280
    %v297 = vmul.f32 %v219, %v276
    %v298 = vmul.f32 %v221, %v280
    %v299 = vmul.f32 %v225, %v276
    %v300 = vmul.f32 %v227, %v280
    %v301 = vmul.f32 %v231, %v276
    %v302 = vmul.f32 %v233, %v280
    %v303 = vmul.f32 %v237, %v276
    %v304 = vmul.f32 %v239, %v280
    %v305 = vmul.f32 %v243, %v276
    %v306 = vmul.f32 %v245, %v280
    %v307 = vmul.f32 %v249, %v276
    %v308 = vmul.f32 %v251, %v280
    %v309 = vmul.f32 %v255, %v276
    %v310 = vmul.f32 %v257, %v280
    %v311 = vmul.f32 %v261, %v276
    %v312 = vmul.f32 %v263, %v280
    %v313 = vmul.f32 %v267, %v276
    %v314 = vmul.f32 %v269, %v280
    %v315 = vld [vmem:[%s3] sm:$0x3]
    %v317 = vlaneseq
    %v318 = vshrl.u32 %v317, 7
    %v319 = vsub.s32 0, %v318
    %v320 = vrot.slane %v315, %v319
    %v321 = vlaneseq
    %v322 = vshrl.u32 %v321, 7
    %v323 = vsub.s32 1, %v322
    %v324 = vrot.slane %v315, %v323
    %v327 = vadd.f32 %v283, %v320
    %v328 = vadd.f32 %v284, %v324
    %v329 = vadd.f32 %v285, %v320
    %v330 = vadd.f32 %v286, %v324
    %v331 = vadd.f32 %v287, %v320
    %v332 = vadd.f32 %v288, %v324
    %v333 = vadd.f32 %v289, %v320
    %v334 = vadd.f32 %v290, %v324
    %v335 = vadd.f32 %v291, %v320
    %v336 = vadd.f32 %v292, %v324
    %v337 = vadd.f32 %v293, %v320
    %v338 = vadd.f32 %v294, %v324
    %v339 = vadd.f32 %v295, %v320
    %v340 = vadd.f32 %v296, %v324
    %v341 = vadd.f32 %v297, %v320
    %v342 = vadd.f32 %v298, %v324
    %v343 = vadd.f32 %v299, %v320
    %v344 = vadd.f32 %v300, %v324
    %v345 = vadd.f32 %v301, %v320
    %v346 = vadd.f32 %v302, %v324
    %v347 = vadd.f32 %v303, %v320
    %v348 = vadd.f32 %v304, %v324
    %v349 = vadd.f32 %v305, %v320
    %v350 = vadd.f32 %v306, %v324
    %v351 = vadd.f32 %v307, %v320
    %v352 = vadd.f32 %v308, %v324
    %v353 = vadd.f32 %v309, %v320
    %v354 = vadd.f32 %v310, %v324
    %v355 = vadd.f32 %v311, %v320
    %v356 = vadd.f32 %v312, %v324
    %v357 = vadd.f32 %v313, %v320
    %v358 = vadd.f32 %v314, %v324
    %v359 = vmax.f32 %v327, 0.0
    %v360 = vmax.f32 %v328, 0.0
    %v361 = vmax.f32 %v329, 0.0
    %v362 = vmax.f32 %v330, 0.0
    %v363 = vmax.f32 %v331, 0.0
    %v364 = vmax.f32 %v332, 0.0
    %v365 = vmax.f32 %v333, 0.0
    %v366 = vmax.f32 %v334, 0.0
    %v367 = vmax.f32 %v335, 0.0
    %v368 = vmax.f32 %v336, 0.0
    %v369 = vmax.f32 %v337, 0.0
    %v370 = vmax.f32 %v338, 0.0
    %v371 = vmax.f32 %v339, 0.0
    %v372 = vmax.f32 %v340, 0.0
    %v373 = vmax.f32 %v341, 0.0
    %v374 = vmax.f32 %v342, 0.0
    %v375 = vmax.f32 %v343, 0.0
    %v376 = vmax.f32 %v344, 0.0
    %v377 = vmax.f32 %v345, 0.0
    %v378 = vmax.f32 %v346, 0.0
    %v379 = vmax.f32 %v347, 0.0
    %v380 = vmax.f32 %v348, 0.0
    %v381 = vmax.f32 %v349, 0.0
    %v382 = vmax.f32 %v350, 0.0
    %v383 = vmax.f32 %v351, 0.0
    %v384 = vmax.f32 %v352, 0.0
    %v385 = vmax.f32 %v353, 0.0
    %v386 = vmax.f32 %v354, 0.0
    %v387 = vmax.f32 %v355, 0.0
    %v388 = vmax.f32 %v356, 0.0
    %v389 = vmax.f32 %v357, 0.0
    %v390 = vmax.f32 %v358, 0.0
    %v391 = vld [vmem:[#allocation7] sm:$0xff]
    %v392 = vld [vmem:[#allocation7 + $0x8] sm:$0xff]
    %v393 = vld [vmem:[#allocation7 + $0x10] sm:$0xff]
    %v394 = vld [vmem:[#allocation7 + $0x18] sm:$0xff]
    %v395 = vld [vmem:[#allocation7 + $0x20] sm:$0xff]
    %v396 = vld [vmem:[#allocation7 + $0x28] sm:$0xff]
    %v397 = vld [vmem:[#allocation7 + $0x30] sm:$0xff]
    %v398 = vld [vmem:[#allocation7 + $0x38] sm:$0xff]
    %v399 = vld [vmem:[#allocation7 + $0x40] sm:$0xff]
    %v400 = vld [vmem:[#allocation7 + $0x48] sm:$0xff]
    %v401 = vld [vmem:[#allocation7 + $0x50] sm:$0xff]
    %v402 = vld [vmem:[#allocation7 + $0x58] sm:$0xff]
    %v403 = vld [vmem:[#allocation7 + $0x60] sm:$0xff]
    %v404 = vld [vmem:[#allocation7 + $0x68] sm:$0xff]
    %v405 = vld [vmem:[#allocation7 + $0x70] sm:$0xff]
    %v406 = vld [vmem:[#allocation7 + $0x78] sm:$0xff]
    %v407 = vld [vmem:[#allocation7 + $0x80] sm:$0xff]
    %v408 = vld [vmem:[#allocation7 + $0x88] sm:$0xff]
    %v409 = vld [vmem:[#allocation7 + $0x90] sm:$0xff]
    %v410 = vld [vmem:[#allocation7 + $0x98] sm:$0xff]
    %v411 = vld [vmem:[#allocation7 + $0xa0] sm:$0xff]
    %v412 = vld [vmem:[#allocation7 + $0xa8] sm:$0xff]
    %v413 = vld [vmem:[#allocation7 + $0xb0] sm:$0xff]
    %v414 = vld [vmem:[#allocation7 + $0xb8] sm:$0xff]
    %v415 = vld [vmem:[#allocation7 + $0xc0] sm:$0xff]
    %v416 = vld [vmem:[#allocation7 + $0xc8] sm:$0xff]
    %v417 = vld [vmem:[#allocation7 + $0xd0] sm:$0xff]
    %v418 = vld [vmem:[#allocation7 + $0xd8] sm:$0xff]
    %v419 = vld [vmem:[#allocation7 + $0xe0] sm:$0xff]
    %v420 = vld [vmem:[#allocation7 + $0xe8] sm:$0xff]
    %v421 = vld [vmem:[#allocation7 + $0xf0] sm:$0xff]
    %v422 = vld [vmem:[#allocation7 + $0xf8] sm:$0xff]
    %v423 = vld [vmem:[#allocation7 + $0x100] sm:$0xff]
    %v424 = vld [vmem:[#allocation7 + $0x108] sm:$0xff]
    %v425 = vld [vmem:[#allocation7 + $0x110] sm:$0xff]
    %v426 = vld [vmem:[#allocation7 + $0x118] sm:$0xff]
    %v427 = vld [vmem:[#allocation7 + $0x120] sm:$0xff]
    %v428 = vld [vmem:[#allocation7 + $0x128] sm:$0xff]
    %v429 = vld [vmem:[#allocation7 + $0x130] sm:$0xff]
    %v430 = vld [vmem:[#allocation7 + $0x138] sm:$0xff]
    %v431 = vld [vmem:[#allocation7 + $0x140] sm:$0xff]
    %v432 = vld [vmem:[#allocation7 + $0x148] sm:$0xff]
    %v433 = vld [vmem:[#allocation7 + $0x150] sm:$0xff]
    %v434 = vld [vmem:[#allocation7 + $0x158] sm:$0xff]
    %v435 = vld [vmem:[#allocation7 + $0x160] sm:$0xff]
    %v436 = vld [vmem:[#allocation7 + $0x168] sm:$0xff]
    %v437 = vld [vmem:[#allocation7 + $0x170] sm:$0xff]
    %v438 = vld [vmem:[#allocation7 + $0x178] sm:$0xff]
    %v439 = vld [vmem:[#allocation7 + $0x180] sm:$0xff]
    %v440 = vld [vmem:[#allocation7 + $0x188] sm:$0xff]
    %v441 = vld [vmem:[#allocation7 + $0x190] sm:$0xff]
    %v442 = vld [vmem:[#allocation7 + $0x198] sm:$0xff]
    %v443 = vld [vmem:[#allocation7 + $0x1a0] sm:$0xff]
    %v444 = vld [vmem:[#allocation7 + $0x1a8] sm:$0xff]
    %v445 = vld [vmem:[#allocation7 + $0x1b0] sm:$0xff]
    %v446 = vld [vmem:[#allocation7 + $0x1b8] sm:$0xff]
    %v447 = vld [vmem:[#allocation7 + $0x1c0] sm:$0xff]
    %v448 = vld [vmem:[#allocation7 + $0x1c8] sm:$0xff]
    %v449 = vld [vmem:[#allocation7 + $0x1d0] sm:$0xff]
    %v450 = vld [vmem:[#allocation7 + $0x1d8] sm:$0xff]
    %v451 = vld [vmem:[#allocation7 + $0x1e0] sm:$0xff]
    %v452 = vld [vmem:[#allocation7 + $0x1e8] sm:$0xff]
    %v453 = vld [vmem:[#allocation7 + $0x1f0] sm:$0xff]
    %v454 = vld [vmem:[#allocation7 + $0x1f8] sm:$0xff]
    %455 = vmatprep.subr.mxu0 %v392
    %456 = vmatpush1.msra.mxu0 %v391
    %457 = vmatprep.subr.mxu0 %v394
    %458 = vmatpush1.msra.mxu0 %v393
    %459 = vmatprep.subr.mxu0 %v396
    %460 = vmatpush1.msra.mxu0 %v395
    %461 = vmatprep.subr.mxu0 %v398
    %462 = vmatpush1.msra.mxu0 %v397
    %463 = vmatprep.subr.mxu0 %v400
    %464 = vmatpush1.msra.mxu0 %v399
    %465 = vmatprep.subr.mxu0 %v402
    %466 = vmatpush1.msra.mxu0 %v401
    %467 = vmatprep.subr.mxu0 %v404
    %468 = vmatpush1.msra.mxu0 %v403
    %469 = vmatprep.subr.mxu0 %v406
    %470 = vmatpush1.msra.mxu0 %v405
    %471 = vmatprep.subr.mxu0 %v408
    %472 = vmatpush1.msra.mxu0 %v407
    %473 = vmatprep.subr.mxu0 %v410
    %474 = vmatpush1.msra.mxu0 %v409
    %475 = vmatprep.subr.mxu0 %v412
    %476 = vmatpush1.msra.mxu0 %v411
    %477 = vmatprep.subr.mxu0 %v414
    %478 = vmatpush1.msra.mxu0 %v413
    %479 = vmatprep.subr.mxu0 %v416
    %480 = vmatpush1.msra.mxu0 %v415
    %481 = vmatprep.subr.mxu0 %v418
    %482 = vmatpush1.msra.mxu0 %v417
    %483 = vmatprep.subr.mxu0 %v420
    %484 = vmatpush1.msra.mxu0 %v419
    %485 = vmatprep.subr.mxu0 %v422
    %486 = vmatpush1.msra.mxu0 %v421
    %487 = vmatprep.subr.mxu0 %v424
    %488 = vmatpush1.msra.mxu0 %v423
    %489 = vmatprep.subr.mxu0 %v426
    %490 = vmatpush1.msra.mxu0 %v425
    %491 = vmatprep.subr.mxu0 %v428
    %492 = vmatpush1.msra.mxu0 %v427
    %493 = vmatprep.subr.mxu0 %v430
    %494 = vmatpush1.msra.mxu0 %v429
    %495 = vmatprep.subr.mxu0 %v432
    %496 = vmatpush1.msra.mxu0 %v431
    %497 = vmatprep.subr.mxu0 %v434
    %498 = vmatpush1.msra.mxu0 %v433
    %499 = vmatprep.subr.mxu0 %v436
    %500 = vmatpush1.msra.mxu0 %v435
    %501 = vmatprep.subr.mxu0 %v438
    %502 = vmatpush1.msra.mxu0 %v437
    %503 = vmatprep.subr.mxu0 %v440
    %504 = vmatpush1.msra.mxu0 %v439
    %505 = vmatprep.subr.mxu0 %v442
    %506 = vmatpush1.msra.mxu0 %v441
    %507 = vmatprep.subr.mxu0 %v444
    %508 = vmatpush1.msra.mxu0 %v443
    %509 = vmatprep.subr.mxu0 %v446
    %510 = vmatpush1.msra.mxu0 %v445
    %511 = vmatprep.subr.mxu0 %v448
    %512 = vmatpush1.msra.mxu0 %v447
    %513 = vmatprep.subr.mxu0 %v450
    %514 = vmatpush1.msra.mxu0 %v449
    %515 = vmatprep.subr.mxu0 %v452
    %516 = vmatpush1.msra.mxu0 %v451
    %517 = vmatprep.subr.mxu0 %v454
    %518 = vmatpush1.msra.mxu0 %v453
    %519 = vmatprep.mubr.f32.mxu0 %v360
    %520 = vmatmul.mubr.f32.gmra.mrb[0].mxu0 %v359
    %v521 = vpop.f32.mrb[0].mxu0
    %v522 = vadd.f32 0.0, %v521
    %v523 = vpop.f32.mrb[0].mxu0
    %v524 = vadd.f32 0.0, %v523
    %525 = vmatprep.mubr.f32.mxu0 %v362
    %526 = vmatmul.mubr.f32.gmra.mrb[0].mxu0 %v361
    %v527 = vpop.f32.mrb[0].mxu0
    %v528 = vadd.f32 0.0, %v527
    %v529 = vpop.f32.mrb[0].mxu0
    %v530 = vadd.f32 0.0, %v529
    %531 = vmatprep.mubr.f32.mxu0 %v364
    %532 = vmatmul.mubr.f32.gmra.mrb[0].mxu0 %v363
    %v533 = vpop.f32.mrb[0].mxu0
    %v534 = vadd.f32 0.0, %v533
    %v535 = vpop.f32.mrb[0].mxu0
    %v536 = vadd.f32 0.0, %v535
    %537 = vmatprep.mubr.f32.mxu0 %v366
    %538 = vmatmul.mubr.f32.gmra.mrb[0].mxu0 %v365
    %v539 = vpop.f32.mrb[0].mxu0
    %v540 = vadd.f32 0.0, %v539
    %v541 = vpop.f32.mrb[0].mxu0
    %v542 = vadd.f32 0.0, %v541
    %543 = vmatprep.mubr.f32.mxu0 %v368
    %544 = vmatmul.mubr.f32.gmra.mrb[0].mxu0 %v367
    %v545 = vpop.f32.mrb[0].mxu0
    %v546 = vadd.f32 0.0, %v545
    %v547 = vpop.f32.mrb[0].mxu0
    %v548 = vadd.f32 0.0, %v547
    %549 = vmatprep.mubr.f32.mxu0 %v370
    %550 = vmatmul.mubr.f32.gmra.mrb[0].mxu0 %v369
    %v551 = vpop.f32.mrb[0].mxu0
    %v552 = vadd.f32 0.0, %v551
    %v553 = vpop.f32.mrb[0].mxu0
    %v554 = vadd.f32 0.0, %v553
    %555 = vmatprep.mubr.f32.mxu0 %v372
    %556 = vmatmul.mubr.f32.gmra.mrb[0].mxu0 %v371
    %v557 = vpop.f32.mrb[0].mxu0
    %v558 = vadd.f32 0.0, %v557
    %v559 = vpop.f32.mrb[0].mxu0
    %v560 = vadd.f32 0.0, %v559
    %561 = vmatprep.mubr.f32.mxu0 %v374
    %562 = vmatmul.mubr.f32.gmra.mrb[0].mxu0 %v373
    %v563 = vpop.f32.mrb[0].mxu0
    %v564 = vadd.f32 0.0, %v563
    %v565 = vpop.f32.mrb[0].mxu0
    %v566 = vadd.f32 0.0, %v565
    %567 = vmatprep.mubr.f32.mxu0 %v376
    %568 = vmatmul.mubr.f32.gmra.mrb[0].mxu0 %v375
    %v569 = vpop.f32.mrb[0].mxu0
    %v570 = vadd.f32 0.0, %v569
    %v571 = vpop.f32.mrb[0].mxu0
    %v572 = vadd.f32 0.0, %v571
    %573 = vmatprep.mubr.f32.mxu0 %v378
    %574 = vmatmul.mubr.f32.gmra.mrb[0].mxu0 %v377
    %v575 = vpop.f32.mrb[0].mxu0
    %v576 = vadd.f32 0.0, %v575
    %v577 = vpop.f32.mrb[0].mxu0
    %v578 = vadd.f32 0.0, %v577
    %579 = vmatprep.mubr.f32.mxu0 %v380
    %580 = vmatmul.mubr.f32.gmra.mrb[0].mxu0 %v379
    %v581 = vpop.f32.mrb[0].mxu0
    %v582 = vadd.f32 0.0, %v581
    %v583 = vpop.f32.mrb[0].mxu0
    %v584 = vadd.f32 0.0, %v583
    %585 = vmatprep.mubr.f32.mxu0 %v382
    %586 = vmatmul.mubr.f32.gmra.mrb[0].mxu0 %v381
    %v587 = vpop.f32.mrb[0].mxu0
    %v588 = vadd.f32 0.0, %v587
    %v589 = vpop.f32.mrb[0].mxu0
    %v590 = vadd.f32 0.0, %v589
    %591 = vmatprep.mubr.f32.mxu0 %v384
    %592 = vmatmul.mubr.f32.gmra.mrb[0].mxu0 %v383
    %v593 = vpop.f32.mrb[0].mxu0
    %v594 = vadd.f32 0.0, %v593
    %v595 = vpop.f32.mrb[0].mxu0
    %v596 = vadd.f32 0.0, %v595
    %597 = vmatprep.mubr.f32.mxu0 %v386
    %598 = vmatmul.mubr.f32.gmra.mrb[0].mxu0 %v385
    %v599 = vpop.f32.mrb[0].mxu0
    %v600 = vadd.f32 0.0, %v599
    %v601 = vpop.f32.mrb[0].mxu0
    %v602 = vadd.f32 0.0, %v601
    %603 = vmatprep.mubr.f32.mxu0 %v388
    %604 = vmatmul.mubr.f32.gmra.mrb[0].mxu0 %v387
    %v605 = vpop.f32.mrb[0].mxu0
    %v606 = vadd.f32 0.0, %v605
    %v607 = vpop.f32.mrb[0].mxu0
    %v608 = vadd.f32 0.0, %v607
    %609 = vmatprep.mubr.f32.mxu0 %v390
    %610 = vmatmul.mubr.f32.gmra.mrb[0].mxu0 %v389
    %v611 = vpop.f32.mrb[0].mxu0
    %v612 = vadd.f32 0.0, %v611
    %v613 = vpop.f32.mrb[0].mxu0
    %v614 = vadd.f32 0.0, %v613
    %615 = vdwg.mxu0
    %616 = vst [vmem:[#allocation8] sm:$0xff] %v522
    %617 = vst [vmem:[#allocation8 + $0x8] sm:$0xff] %v524
    %618 = vst [vmem:[#allocation8 + $0x10] sm:$0xff] %v528
    %619 = vst [vmem:[#allocation8 + $0x18] sm:$0xff] %v530
    %620 = vst [vmem:[#allocation8 + $0x20] sm:$0xff] %v534
    %621 = vst [vmem:[#allocation8 + $0x28] sm:$0xff] %v536
    %622 = vst [vmem:[#allocation8 + $0x30] sm:$0xff] %v540
    %623 = vst [vmem:[#allocation8 + $0x38] sm:$0xff] %v542
    %624 = vst [vmem:[#allocation8 + $0x40] sm:$0xff] %v546
    %625 = vst [vmem:[#allocation8 + $0x48] sm:$0xff] %v548
    %626 = vst [vmem:[#allocation8 + $0x50] sm:$0xff] %v552
    %627 = vst [vmem:[#allocation8 + $0x58] sm:$0xff] %v554
    %628 = vst [vmem:[#allocation8 + $0x60] sm:$0xff] %v558
    %629 = vst [vmem:[#allocation8 + $0x68] sm:$0xff] %v560
    %630 = vst [vmem:[#allocation8 + $0x70] sm:$0xff] %v564
    %631 = vst [vmem:[#allocation8 + $0x78] sm:$0xff] %v566
    %632 = vst [vmem:[#allocation8 + $0x80] sm:$0xff] %v570
    %633 = vst [vmem:[#allocation8 + $0x88] sm:$0xff] %v572
    %634 = vst [vmem:[#allocation8 + $0x90] sm:$0xff] %v576
    %635 = vst [vmem:[#allocation8 + $0x98] sm:$0xff] %v578
    %636 = vst [vmem:[#allocation8 + $0xa0] sm:$0xff] %v582
    %637 = vst [vmem:[#allocation8 + $0xa8] sm:$0xff] %v584
    %638 = vst [vmem:[#allocation8 + $0xb0] sm:$0xff] %v588
    %639 = vst [vmem:[#allocation8 + $0xb8] sm:$0xff] %v590
    %640 = vst [vmem:[#allocation8 + $0xc0] sm:$0xff] %v594
    %641 = vst [vmem:[#allocation8 + $0xc8] sm:$0xff] %v596
    %642 = vst [vmem:[#allocation8 + $0xd0] sm:$0xff] %v600
    %643 = vst [vmem:[#allocation8 + $0xd8] sm:$0xff] %v602
    %644 = vst [vmem:[#allocation8 + $0xe0] sm:$0xff] %v606
    %645 = vst [vmem:[#allocation8 + $0xe8] sm:$0xff] %v608
    %646 = vst [vmem:[#allocation8 + $0xf0] sm:$0xff] %v612
    %647 = vst [vmem:[#allocation8 + $0xf8] sm:$0xff] %v614
    // Predicated region
    $region34: #{tpu_custom_call.1} parent=1 // pred_check
      _
    $region35: #{tpu_custom_call.1} parent=1 // pred_check_branch
      %649 = sbr.rel (0) target = $region37
    $region36: #{tpu_custom_call.1} parent=1 // pred_region
      %s651 = ssub.s32 4096, 4096
      %652 = vsyncadd [#allocation4], %s651
      %s653 = sshll.u32 [#allocation8], 4
      %s654 = int_to_ptr.vmem [resolvable:$true] %s653
      %659 = dma.vmem_to_hbm [thread:$0]  %s654, 4096, %s5, [#allocation4], 256, 256, 16
    $region37: #{tpu_custom_call.1} parent=1 // pred_fallthru
      _
    // Predicated region
    $region38: #{tpu_custom_call.1} parent=1 // pred_check
      _
    $region39: #{tpu_custom_call.1} parent=1 // pred_check_branch
      %661 = sbr.rel (0) target = $region41
    $region40: #{tpu_custom_call.1} parent=1 // pred_region
      %662 = dma.done [#allocation4], 4096
    $region41: #{tpu_custom_call.1} parent=1 // pred_fallthru
      _
    %663 = vsyncpa [#allocation3], 1
    %664 = vsyncpa [#allocation6], 1
    %665 = vsyncpa [#allocation4], 1

</llo_original>
